<compile_context>
chip_gen: v7x
topology: tpu7x:2x2x1
jax: 0.10.0
libtpu: 0.0.40
codegen_flags: <defaults>
</compile_context>

<pallas_src>
import math

import jax
import jax.numpy as jnp
from jax.experimental import pallas as pl
from jax.experimental.pallas import tpu as pltpu


def _build_sinusoidal_pe(max_len: int, d_model: int) -> jnp.ndarray:
    """Deterministic sinusoidal table, identical to the PyTorch __init__."""
    position = jnp.arange(0, max_len, dtype=jnp.float32)[:, None]            # (max_len, 1)
    div_term = jnp.exp(
        jnp.arange(0, d_model, 2, dtype=jnp.float32)
        * (-math.log(10000.0) / d_model)
    )                                                                        # (ceil(D/2),)
    angles = position * div_term                                             # (max_len, ceil(D/2))
    pe = jnp.zeros((max_len, d_model), dtype=jnp.float32)
    pe = pe.at[:, 0::2].set(jnp.sin(angles))
    pe = pe.at[:, 1::2].set(jnp.cos(angles)[:, : d_model // 2])              # odd-D safe
    return pe                                                                # (max_len, d_model)


def _add_pe_kernel(x_ref, pe_ref, o_ref):
    # x_ref / o_ref: (BB, TR, C); pe_ref: (TR, C) broadcasts over the leading dim.
    # Pure VPU elementwise add.
    o_ref[...] = x_ref[...] + pe_ref[...]


# Sublane packing per itemsize: f32 -> 8 rows, bf16/f16 -> 16, int8/fp8 -> 32.
_SUBLANE = {4: 8, 2: 16, 1: 32}


def _round_down(v: int, m: int) -> int:
    return (v // m) * m


def _chip_tuning():
    """Return (per-tile byte target, vmem_limit_bytes) based on physical VMEM."""
    try:
        vmem = pltpu.get_tpu_info().vmem_capacity_bytes
    except Exception:
        vmem = 64 << 20  # conservative default if the query is unavailable
    if vmem <= (64 << 20):
        # v7x-class: 64 MiB VMEM, ~3.2 TB/s HBM -> bigger tiles to amortize
        # the ~0.35us per-grid-step overhead; 3 specs x 2 bufs x 6 MiB = 36 MiB.
        return 6 << 20, 48 << 20
    # v5e / v6e: 128 MiB physical VMEM; raise the scoped limit explicitly so the
    # 16 MiB (v5e) / 32 MiB (v6e) defaults never constrain 4 MiB tiles.
    return 4 << 20, 64 << 20


def positional_encoding_forward(
    x: jnp.ndarray, pe_full: jnp.ndarray, *, min_pallas_bytes: int = 1 << 20
) -> jnp.ndarray:
    """x: (B, S, D), pe_full: (max_len, D) -> (B, S, D)."""
    B, S, D = x.shape
    itemsize = jnp.dtype(x.dtype).itemsize

    # Tiny inputs: pallas_call launch + pipeline fixed cost dominates; XLA's
    # fused broadcast-add is strictly faster.
    if B * S * D * itemsize < min_pallas_bytes:
        return x + pe_full[None, :S, :].astype(x.dtype)

    # NOTE: the slice/cast/reshape of pe below could be hoisted to module init
    # (it only depends on S, D, dtype); kept inline here for a self-contained fn.
    pe = pe_full[:S, :].astype(x.dtype)

    # ---- Lane-dense reflow of the (S, D) plane (identical for x and pe) ----
    E = S * D
    C = None
    for lw in (512, 256, 128):
        if E % lw == 0:
            C = lw
            break
    if C is None:
        C = 128                      # pad the flat plane up to a multiple of 128
    Ep = pl.cdiv(E, C) * C
    pad = Ep - E

    x_flat = x.reshape(B, E)
    pe_flat = pe.reshape(E)
    if pad:
        x_flat = jnp.pad(x_flat, ((0, 0), (0, pad)))
        pe_flat = jnp.pad(pe_flat, (0, pad))
    R = Ep // C
    x3 = x_flat.reshape(B, R, C)
    pe2 = pe_flat.reshape(R, C)

    # ---- Tile selection -----------------------------------------------------
    target_bytes, vmem_limit = _chip_tuning()
    sub = _SUBLANE.get(itemsize, 8)
    row_bytes = C * itemsize

    # Prefer folding the whole batch into one block (B-fewer grid steps, pe
    # amortized within a step) when that still leaves a reasonable row tile.
    tr_folded = _round_down(target_bytes // max(B * row_bytes, 1), sub)
    fold_batch = tr_folded >= sub

    if fold_batch:
        TR = min(tr_folded, pl.cdiv(R, sub) * sub)
        # Megacore (v7x): keep >=2 steps on the parallel axis when possible.
        if pl.cdiv(R, TR) < 2 and R >= 2 * sub:
            TR = pl.cdiv(pl.cdiv(R, 2), sub) * sub
        grid = (pl.cdiv(R, TR),)
        x_spec = pl.BlockSpec((B, TR, C), lambda r: (0, r, 0))
        pe_spec = pl.BlockSpec((TR, C), lambda r: (r, 0))
        out_spec = pl.BlockSpec((B, TR, C), lambda r: (0, r, 0))
        semantics = ("parallel",)
    else:
        TR = max(sub, _round_down(target_bytes // row_bytes, sub))
        TR = min(TR, pl.cdiv(R, sub) * sub)
        if B == 1 and pl.cdiv(R, TR) < 2 and R >= 2 * sub:
            TR = pl.cdiv(pl.cdiv(R, 2), sub) * sub
        # B innermost: each pe tile is DMA'd once and stays resident across B.
        grid = (pl.cdiv(R, TR), B)
        x_spec = pl.BlockSpec((1, TR, C), lambda r, b: (b, r, 0))
        pe_spec = pl.BlockSpec((TR, C), lambda r, b: (r, 0))
        out_spec = pl.BlockSpec((1, TR, C), lambda r, b: (b, r, 0))
        semantics = ("parallel", "parallel")

    out3 = pl.pallas_call(
        _add_pe_kernel,
        out_shape=jax.ShapeDtypeStruct((B, R, C), x.dtype),
        grid=grid,
        in_specs=[x_spec, pe_spec],
        out_specs=out_spec,
        input_output_aliases={0: 0},            # donate the reflowed x buffer
        compiler_params=pltpu.CompilerParams(
            dimension_semantics=semantics,
            vmem_limit_bytes=vmem_limit,
        ),
        cost_estimate=pl.CostEstimate(
            flops=B * Ep,
            transcendentals=0,
            bytes_accessed=(2 * B * Ep + Ep) * itemsize,
        ),
    )(x3, pe2)

    out_flat = out3.reshape(B, Ep)
    if pad:
        out_flat = out_flat[:, :E]
    return out_flat.reshape(B, S, D)


if __name__ == "__main__":
    # Small shapes consistent with the module's forward: (batch, seq, d_model).
    key = jax.random.PRNGKey(0)

    # --- Test 1: canonical shape (S*D already a multiple of 128) ------------
    B, S, D = 2, 8, 32
    MAX_LEN = 64
    x = jax.random.normal(key, (B, S, D), dtype=jnp.float32)
    pe_full = _build_sinusoidal_pe(MAX_LEN, D)
    ref = x + pe_full[None, :S, :]                      # reference computed first

    # min_pallas_bytes=0 forces the Pallas path even at this tiny test size.
    out = jax.block_until_ready(
        positional_encoding_forward(x, pe_full, min_pallas_bytes=0)
    )
    assert out.shape == (B, S, D)
    assert jnp.allclose(out, ref, atol=1e-6), "mismatch vs reference (test 1)"

    # --- Test 2: S*D not a multiple of 128 -> exercises the padding path ----
    B2, S2, D2 = 2, 7, 36
    x2 = jax.random.normal(jax.random.PRNGKey(1), (B2, S2, D2), dtype=jnp.float32)
    pe_full2 = _build_sinusoidal_pe(MAX_LEN, D2)
    ref2 = x2 + pe_full2[None, :S2, :]
    out2 = jax.block_until_ready(
        positional_encoding_forward(x2, pe_full2, min_pallas_bytes=0)
    )
    assert out2.shape == (B2, S2, D2)
    assert jnp.allclose(out2, ref2, atol=1e-6), "mismatch vs reference (test 2)"

    print("KERNEL_OK")
</pallas_src>

<mosaic_0001>
module attributes {stable_mosaic.version = 11 : i64} {
  func.func @_add_pe_kernel(%arg0: i32, %arg1: memref<2x8x256xf32, #tpu.memory_space<vmem>>, %arg2: memref<8x256xf32, #tpu.memory_space<vmem>>, %arg3: memref<2x8x256xf32, #tpu.memory_space<vmem>>) attributes {dimension_semantics = [#tpu.dimension_semantics<parallel>], iteration_bounds = array<i64: 1>, scalar_prefetch = 0 : i64, scratch_operands = 0 : i64, tpu.core_type = #tpu.core_type<tc>, window_params = [{transform_indices = @transform_0, window_bounds = array<i64: 2, 8, 256>}, {transform_indices = @transform_1, window_bounds = array<i64: 8, 256>}, {transform_indices = @transform_2, window_bounds = array<i64: 2, 8, 256>}]} {
    %c0 = arith.constant 0 : index
    %c0_0 = arith.constant 0 : index
    %c0_1 = arith.constant 0 : index
    %0 = vector.load %arg1[%c0, %c0_0, %c0_1] : memref<2x8x256xf32, #tpu.memory_space<vmem>>, vector<2x8x256xf32>
    %c0_2 = arith.constant 0 : index
    %c0_3 = arith.constant 0 : index
    %1 = vector.load %arg2[%c0_2, %c0_3] : memref<8x256xf32, #tpu.memory_space<vmem>>, vector<8x256xf32>
    %2 = vector.shape_cast %1 : vector<8x256xf32> to vector<1x8x256xf32>
    %3 = vector.broadcast %2 : vector<1x8x256xf32> to vector<2x8x256xf32>
    %4 = arith.addf %0, %3 : vector<2x8x256xf32>
    %c0_4 = arith.constant 0 : index
    %c0_5 = arith.constant 0 : index
    %c0_6 = arith.constant 0 : index
    %5 = vector.load %arg3[%c0_4, %c0_5, %c0_6] : memref<2x8x256xf32, #tpu.memory_space<vmem>>, vector<2x8x256xf32>
    tpu.vector_store %arg3[%c0_4, %c0_5, %c0_6], %4 {strides = array<i32>} : memref<2x8x256xf32, #tpu.memory_space<vmem>>, vector<2x8x256xf32>,
    return
  }
  func.func @transform_0(%arg0: i32) -> (i32, i32, i32) {
    %c0_i32 = arith.constant 0 : i32
    %c0_i32_0 = arith.constant 0 : i32
    %c0_i32_1 = arith.constant 0 : i32
    return %c0_i32, %arg0, %c0_i32_0 : i32, i32, i32
  }
  func.func @transform_1(%arg0: i32) -> (i32, i32) {
    %c0_i32 = arith.constant 0 : i32
    %c0_i32_0 = arith.constant 0 : i32
    return %arg0, %c0_i32 : i32, i32
  }
  func.func @transform_2(%arg0: i32) -> (i32, i32, i32) {
    %c0_i32 = arith.constant 0 : i32
    %c0_i32_0 = arith.constant 0 : i32
    %c0_i32_1 = arith.constant 0 : i32
    return %c0_i32, %arg0, %c0_i32_0 : i32, i32, i32
  }
}

</mosaic_0001>

<llo_original>
// kernel: tpu_custom_call.1
$region0: #{tpu_custom_call.1}
  #allocation0 [shape = 'u32[]', space=smem, size = 0x4, offset = 0x4, fixed_abs, tag = 'smem constant byte address 0x4 - core index']
  #allocation1 [shape = 'u32[144,128]{1,0:T(1,128)}', space=vmem, size = 0x12000, scoped, tag = 'internal scratch']
  #allocation6 [shape = 's32[]', space=sflag, size = 0x4, offset = 0, fixed_abs, tag = 'sflag constant byte address 0x0 - dummy sync flag']
  #allocation8 [shape = 's32[]', space=sflag, size = 0x4, offset = 0, fixed_abs, tag = 'sflag constant byte address 0x0 - dummy sync flag']
  %s0 = inlined_call_operand.hbm [shape: f32[2,1,256], index: 0, kind: input, shape index: {}, may-alias: {0,2}]
  %s1 = inlined_call_operand.vmem [shape: f32[1,256], index: 1, kind: input, shape index: {}]
  %s2 = inlined_call_operand.hbm [shape: f32[2,1,256], index: 2, kind: output, shape index: {}, may-alias: {0,2}]
  %s3 = sld [smem:[#allocation0]]
  $region22: #{tpu_custom_call.1} parent=0
    _
  %s5 = ssub.s32 1, %s3
  %s6 = scalar_select 0, %s5, %s3
  $region1: #{tpu_custom_call.1} parent=0
    #allocation2 [shape = 'u8[16384]{0}', space=vmem, size = 0x4000, scoped, tag = 'input window, operand 0, single buffered']
    #allocation3 [shape = 's32[1]{0}', space=sflag, size = 0x4, scoped, tag = 'scoped memory for tpu_custom_call.1']
    #allocation4 [shape = 's32[1]{0}', space=sflag, size = 0x4, scoped, tag = 'scoped memory for tpu_custom_call.1']
    #allocation5 [shape = 'u8[16384]{0}', space=vmem, size = 0x4000, scoped, tag = 'output window, operand 0, single buffered']
    %7 = vsyncpa [#allocation3], 0
    %8 = vsyncpa [#allocation4], 0
    // Predicated region
    $region2: #{tpu_custom_call.1} parent=1 // pred_check
      _
    $region3: #{tpu_custom_call.1} parent=1 // pred_check_branch
      %10 = sbr.rel (0) target = $region5
    $region4: #{tpu_custom_call.1} parent=1 // pred_region
      #allocation7 [shape = 'u32[6]{0}', space=smem, size = 0x18, scoped, tag = 'DMA stride descriptor']
      %s12 = ssub.s32 512, 64
      %13 = vsyncadd [#allocation3], %s12
      %s15 = sshll.u32 1, 14
      %s16 = sxor.u32 4294967295, %s15
      %s18 = sld [smem:[#allocation0]]
      %s19 = sadd.s32 2, %s18
      %s21 = sshll.u32 7, 26
      %s22 = sxor.u32 4294967295, %s21
      %s23 = sand.u32 0, %s22
      %s24 = sshll.u32 %s19, 26
      %s25 = sor.u32 %s23, %s24
      %s26 = sshll.u32 [#allocation2], 4
      %s27 = int_to_ptr.vmem [resolvable:$true] %s26
      %33 = sst [smem:[#allocation7]] 32
      %s34 = scalar_lea.smem [#allocation7], 1
      %35 = sst [smem:[%s34]] 256
      %s36 = scalar_lea.smem [#allocation7], 2
      %37 = sst [smem:[%s36]] 1
      %s38 = scalar_lea.smem [#allocation7], 3
      %39 = sst [smem:[%s38]] 32
      %s40 = scalar_lea.smem [#allocation7], 4
      %41 = sst [smem:[%s40]] 32
      %s42 = scalar_lea.smem [#allocation7], 5
      %43 = sst [smem:[%s42]] 2
      %45 = dma.general %s0, 64, %s27, [#allocation3], [#allocation6], [#allocation7], %s25, 0
    $region5: #{tpu_custom_call.1} parent=1 // pred_fallthru
      _
    // Predicated region
    $region6: #{tpu_custom_call.1} parent=1 // pred_check
      _
    $region7: #{tpu_custom_call.1} parent=1 // pred_check_branch
      %47 = sbr.rel (0) target = $region9
    $region8: #{tpu_custom_call.1} parent=1 // pred_region
      _
    $region9: #{tpu_custom_call.1} parent=1 // pred_fallthru
      _
    // Predicated region
    $region10: #{tpu_custom_call.1} parent=1 // pred_check
      _
    $region11: #{tpu_custom_call.1} parent=1 // pred_check_branch
      %49 = sbr.rel (0) target = $region13
    $region12: #{tpu_custom_call.1} parent=1 // pred_region
      %50 = dma.done [#allocation3], 512
    $region13: #{tpu_custom_call.1} parent=1 // pred_fallthru
      _
    %v51 = vld [vmem:[#allocation2] sm:$0x3]
    %v52 = vld [vmem:[#allocation2 + $0x2] sm:$0x3]
    %v53 = vld [vmem:[#allocation2 + $0x4] sm:$0x3]
    %v54 = vld [vmem:[#allocation2 + $0x6] sm:$0x3]
    %v55 = vld [vmem:[#allocation2 + $0x8] sm:$0x3]
    %v56 = vld [vmem:[#allocation2 + $0xa] sm:$0x3]
    %v57 = vld [vmem:[#allocation2 + $0xc] sm:$0x3]
    %v58 = vld [vmem:[#allocation2 + $0xe] sm:$0x3]
    %v59 = vld [vmem:[#allocation2 + $0x10] sm:$0x3]
    %v60 = vld [vmem:[#allocation2 + $0x12] sm:$0x3]
    %v61 = vld [vmem:[#allocation2 + $0x14] sm:$0x3]
    %v62 = vld [vmem:[#allocation2 + $0x16] sm:$0x3]
    %v63 = vld [vmem:[#allocation2 + $0x18] sm:$0x3]
    %v64 = vld [vmem:[#allocation2 + $0x1a] sm:$0x3]
    %v65 = vld [vmem:[#allocation2 + $0x1c] sm:$0x3]
    %v66 = vld [vmem:[#allocation2 + $0x1e] sm:$0x3]
    %v67 = vld [vmem:[%s1] sm:$0x3]
    %v68 = vld [vmem:[%s1 + $0x2] sm:$0x3]
    %v69 = vld [vmem:[%s1 + $0x4] sm:$0x3]
    %v70 = vld [vmem:[%s1 + $0x6] sm:$0x3]
    %v71 = vld [vmem:[%s1 + $0x8] sm:$0x3]
    %v72 = vld [vmem:[%s1 + $0xa] sm:$0x3]
    %v73 = vld [vmem:[%s1 + $0xc] sm:$0x3]
    %v74 = vld [vmem:[%s1 + $0xe] sm:$0x3]
    %v75 = vadd.f32 %v51, %v67
    %v76 = vadd.f32 %v52, %v68
    %v77 = vadd.f32 %v53, %v69
    %v78 = vadd.f32 %v54, %v70
    %v79 = vadd.f32 %v55, %v71
    %v80 = vadd.f32 %v56, %v72
    %v81 = vadd.f32 %v57, %v73
    %v82 = vadd.f32 %v58, %v74
    %v83 = vadd.f32 %v59, %v67
    %v84 = vadd.f32 %v60, %v68
    %v85 = vadd.f32 %v61, %v69
    %v86 = vadd.f32 %v62, %v70
    %v87 = vadd.f32 %v63, %v71
    %v88 = vadd.f32 %v64, %v72
    %v89 = vadd.f32 %v65, %v73
    %v90 = vadd.f32 %v66, %v74
    %v91 = vlaneseq
    %vm92 = vcmp.ge.s32.totalorder %v91, 0
    %vm93 = vcmp.lt.s32.totalorder %v91, 256
    %vm94 = vmand %vm92, %vm93
    %95 = vst.msk [vmem:[#allocation5] sm:$0x3] %vm94, %v75
    %96 = vst.msk [vmem:[#allocation5 + $0x2] sm:$0x3] %vm94, %v76
    %97 = vst.msk [vmem:[#allocation5 + $0x4] sm:$0x3] %vm94, %v77
    %98 = vst.msk [vmem:[#allocation5 + $0x6] sm:$0x3] %vm94, %v78
    %99 = vst.msk [vmem:[#allocation5 + $0x8] sm:$0x3] %vm94, %v79
    %100 = vst.msk [vmem:[#allocation5 + $0xa] sm:$0x3] %vm94, %v80
    %101 = vst.msk [vmem:[#allocation5 + $0xc] sm:$0x3] %vm94, %v81
    %102 = vst.msk [vmem:[#allocation5 + $0xe] sm:$0x3] %vm94, %v82
    %103 = vst.msk [vmem:[#allocation5 + $0x10] sm:$0x3] %vm94, %v83
    %104 = vst.msk [vmem:[#allocation5 + $0x12] sm:$0x3] %vm94, %v84
    %105 = vst.msk [vmem:[#allocation5 + $0x14] sm:$0x3] %vm94, %v85
    %106 = vst.msk [vmem:[#allocation5 + $0x16] sm:$0x3] %vm94, %v86
    %107 = vst.msk [vmem:[#allocation5 + $0x18] sm:$0x3] %vm94, %v87
    %108 = vst.msk [vmem:[#allocation5 + $0x1a] sm:$0x3] %vm94, %v88
    %109 = vst.msk [vmem:[#allocation5 + $0x1c] sm:$0x3] %vm94, %v89
    %110 = vst.msk [vmem:[#allocation5 + $0x1e] sm:$0x3] %vm94, %v90
    // Predicated region
    $region14: #{tpu_custom_call.1} parent=1 // pred_check
      _
    $region15: #{tpu_custom_call.1} parent=1 // pred_check_branch
      %112 = sbr.rel (0) target = $region17
    $region16: #{tpu_custom_call.1} parent=1 // pred_region
      #allocation9 [shape = 'u32[6]{0}', space=smem, size = 0x18, scoped, tag = 'DMA stride descriptor']
      %s114 = ssub.s32 512, 64
      %115 = vsyncadd [#allocation4], %s114
      %s117 = sshll.u32 1, 14
      %s118 = sxor.u32 4294967295, %s117
      %s121 = sshll.u32 7, 18
      %s122 = sxor.u32 4294967295, %s121
      %s123 = sand.u32 0, %s122
      %s125 = sor.u32 %s123, 0
      %s127 = sshll.u32 3, 24
      %s128 = sxor.u32 4294967295, %s127
      %s129 = sand.u32 %s125, %s128
      %s131 = sor.u32 %s129, 0
      %s132 = sshll.u32 [#allocation5], 4
      %s133 = int_to_ptr.vmem [resolvable:$true] %s132
      %139 = sst [smem:[#allocation9]] 256
      %s140 = scalar_lea.smem [#allocation9], 1
      %141 = sst [smem:[%s140]] 32
      %s142 = scalar_lea.smem [#allocation9], 2
      %143 = sst [smem:[%s142]] 1
      %s144 = scalar_lea.smem [#allocation9], 3
      %145 = sst [smem:[%s144]] 32
      %s146 = scalar_lea.smem [#allocation9], 4
      %147 = sst [smem:[%s146]] 32
      %s148 = scalar_lea.smem [#allocation9], 5
      %149 = sst [smem:[%s148]] 2
      %151 = dma.general %s133, 64, %s2, [#allocation4], [#allocation8], [#allocation9], %s131, 0
    $region17: #{tpu_custom_call.1} parent=1 // pred_fallthru
      _
    // Predicated region
    $region18: #{tpu_custom_call.1} parent=1 // pred_check
      _
    $region19: #{tpu_custom_call.1} parent=1 // pred_check_branch
      %153 = sbr.rel (0) target = $region21
    $region20: #{tpu_custom_call.1} parent=1 // pred_region
      %154 = dma.done [#allocation4], 512
    $region21: #{tpu_custom_call.1} parent=1 // pred_fallthru
      _
    %155 = vsyncpa [#allocation3], 1
    %156 = vsyncpa [#allocation4], 1

</llo_original>
